<compile_context>
chip_gen: v7x
topology: tpu7x:2x2x1
jax: 0.10.0
libtpu: 0.0.40
codegen_flags: <defaults>
</compile_context>

<pallas_src>
import functools
import math

import jax
import jax.numpy as jnp
from jax.experimental import pallas as pl
from jax.experimental.pallas import tpu as pltpu

D_MODEL = 32
MAX_LEN = 5000
DROPOUT_P = 0.5

LANES = 128          # lane-dense last dim of the flattened slab
MAX_BLOCK_ROWS = 1024  # 1024 x 128 x 4B = 512 KiB per f32 buffer


def make_positional_encoding(d_model: int, max_len: int, dtype=jnp.float32):
    """Deterministic buffer, identical to the PyTorch __init__ math. (L, D)."""
    position = jnp.arange(max_len, dtype=jnp.float32)[:, None]          # (L, 1)
    div_term = jnp.exp(
        jnp.arange(0, d_model, 2, dtype=jnp.float32)
        * (-math.log(10000.0) / d_model)
    )                                                                   # (D/2,)
    angles = position * div_term                                        # (L, D/2)
    pe = jnp.zeros((max_len, d_model), jnp.float32)
    pe = pe.at[:, 0::2].set(jnp.sin(angles))
    pe = pe.at[:, 1::2].set(jnp.cos(angles))
    return pe.astype(dtype)


def _is_pow2(n: int) -> bool:
    return n > 0 and (n & (n - 1)) == 0


def _pe_dropout_kernel(*refs, block_rows, lanes, bd_shift, d_mask, d_model,
                       has_pe_input, apply_dropout):
    """Refs (in order): x, [pe], [dropout_scale], out. All (block_rows, lanes)."""
    refs = list(refs)
    x_ref = refs.pop(0)
    pe_ref = refs.pop(0) if has_pe_input else None
    scale_ref = refs.pop(0) if apply_dropout else None
    o_ref = refs.pop(0)

    x = x_ref[...]

    if has_pe_input:
        pe = pe_ref[...].astype(x.dtype)
    else:
        # Recover (s, d) of each element of the flat row-major (S, B, D) layout
        # and evaluate pe[s, d] on the fly.  Requires D and B*D powers of two
        # (shift / mask only -- no vector integer division).
        base = pl.program_id(0) * (block_rows * lanes)
        r = jax.lax.broadcasted_iota(jnp.int32, (block_rows, lanes), 0)
        c = jax.lax.broadcasted_iota(jnp.int32, (block_rows, lanes), 1)
        flat = base + r * lanes + c
        s = (flat >> bd_shift).astype(jnp.float32)        # seq position
        d = flat & d_mask                                 # feature index
        parity = d & 1
        d_base = (d - parity).astype(jnp.float32)         # 2 * (d // 2)
        inv_freq = jnp.exp(d_base * (-math.log(10000.0) / float(d_model)))
        angle = s * inv_freq
        pe = jnp.where(parity == 0, jnp.sin(angle), jnp.cos(angle)).astype(x.dtype)

    y = x + pe
    if apply_dropout:
        # scale_ref holds 0.0 (dropped) or 1/keep_prob (kept): inverted dropout.
        y = y * scale_ref[...]
    o_ref[...] = y.astype(o_ref.dtype)


def positional_encoding_forward(x, *, dropout_p=DROPOUT_P, training=True,
                                rng_key=None):
    """x: (S, B, D).  Returns dropout(x + pe[:S]) with the same shape/dtype."""
    S, B, D = x.shape
    dtype = x.dtype
    total = S * B * D
    keep_prob = 1.0 - float(dropout_p)
    apply_dropout = bool(training) and keep_prob < 1.0

    # ---- lane-dense slab layout: flatten to (rows, 128), pad the tail -------
    rows = -(-total // LANES)
    block_rows = rows if rows <= MAX_BLOCK_ROWS else MAX_BLOCK_ROWS
    num_blocks = -(-rows // block_rows)
    padded_rows = num_blocks * block_rows
    padded_total = padded_rows * LANES

    def to_slab(a):
        flat = a.reshape(-1)
        if padded_total != total:
            flat = jnp.pad(flat, (0, padded_total - total))
        return flat.reshape(padded_rows, LANES)

    compute_pe_in_kernel = _is_pow2(D) and _is_pow2(B * D)

    spec = pl.BlockSpec((block_rows, LANES), lambda i: (i, 0))
    inputs = [to_slab(x)]
    in_specs = [spec]

    if not compute_pe_in_kernel:
        # Generic fallback: pre-broadcast pe to x's layout (extra HBM stream,
        # but keeps the kernel free of unsupported vector integer division).
        pe_tab = make_positional_encoding(D, S)                       # (S, D)
        pe_full = jnp.broadcast_to(pe_tab[:, None, :], (S, B, D)).astype(dtype)
        inputs.append(to_slab(pe_full))
        in_specs.append(spec)

    if apply_dropout:
        if rng_key is None:
            rng_key = jax.random.PRNGKey(0)
        keep = jax.random.bernoulli(rng_key, keep_prob, x.shape)
        scale = jnp.where(keep, 1.0 / keep_prob, 0.0).astype(dtype)
        inputs.append(to_slab(scale))
        in_specs.append(spec)

    kernel = functools.partial(
        _pe_dropout_kernel,
        block_rows=block_rows,
        lanes=LANES,
        bd_shift=(B * D).bit_length() - 1 if compute_pe_in_kernel else 0,
        d_mask=(D - 1) if compute_pe_in_kernel else 0,
        d_model=D,
        has_pe_input=not compute_pe_in_kernel,
        apply_dropout=apply_dropout,
    )

    out_slab = pl.pallas_call(
        kernel,
        out_shape=jax.ShapeDtypeStruct((padded_rows, LANES), dtype),
        grid=(num_blocks,),
        in_specs=in_specs,
        out_specs=spec,
        compiler_params=pltpu.CompilerParams(
            dimension_semantics=("parallel",)),
    )(*inputs)

    return out_slab.reshape(-1)[:total].reshape(S, B, D)


if __name__ == "__main__":
    S, B, D = 8, 2, D_MODEL

    key = jax.random.PRNGKey(0)
    kx, kmask = jax.random.split(key)
    x = jax.random.normal(kx, (S, B, D), dtype=jnp.float32)

    pe_table = make_positional_encoding(D, MAX_LEN)
    ref = x + pe_table[:S][:, None, :]

    # Eval-mode path (dropout is identity): exact semantics of x + pe[:S].
    y_eval = positional_encoding_forward(x, training=False)
    y_eval = jax.block_until_ready(y_eval)
    assert y_eval.shape == (S, B, D)
    assert jnp.allclose(y_eval, ref, atol=1e-5), "eval-mode mismatch"

    # Training-mode path (dropout p=0.5).  Mask is deterministic given kmask,
    # so we can check the output exactly.
    y_train = positional_encoding_forward(x, dropout_p=DROPOUT_P,
                                          training=True, rng_key=kmask)
    y_train = jax.block_until_ready(y_train)
    keep = jax.random.bernoulli(kmask, 1.0 - DROPOUT_P, x.shape)
    expected = jnp.where(keep, ref / (1.0 - DROPOUT_P), 0.0)
    assert y_train.shape == (S, B, D)
    assert jnp.allclose(y_train, expected, atol=1e-5), "train-mode mismatch"

    # Exercise the generic fallback path (non power-of-two B*D) + tail padding.
    S2, B2, D2 = 5, 3, 32
    x2 = jax.random.normal(jax.random.PRNGKey(1), (S2, B2, D2), dtype=jnp.float32)
    y2 = positional_encoding_forward(x2, training=False)
    y2 = jax.block_until_ready(y2)
    ref2 = x2 + make_positional_encoding(D2, S2)[:, None, :]
    assert jnp.allclose(y2, ref2, atol=1e-5), "fallback-path mismatch"

    print("KERNEL_OK")
</pallas_src>

<mosaic_0001>
module attributes {stable_mosaic.version = 11 : i64} {
  func.func @_pe_dropout_kernel(%arg0: i32, %arg1: memref<4x128xf32, #tpu.memory_space<vmem>>, %arg2: memref<4x128xf32, #tpu.memory_space<vmem>>) attributes {dimension_semantics = [#tpu.dimension_semantics<parallel>], iteration_bounds = array<i64: 1>, scalar_prefetch = 0 : i64, scratch_operands = 0 : i64, tpu.core_type = #tpu.core_type<tc>, window_params = [{transform_indices = @transform_0, window_bounds = array<i64: 4, 128>}, {transform_indices = @transform_1, window_bounds = array<i64: 4, 128>}]} {
    %c0 = arith.constant 0 : index
    %c0_0 = arith.constant 0 : index
    %0 = vector.load %arg1[%c0, %c0_0] : memref<4x128xf32, #tpu.memory_space<vmem>>, vector<4x128xf32>
    %c512_i32 = arith.constant 512 : i32
    %1 = arith.muli %arg0, %c512_i32 : i32
    %2 = tpu.iota {dimensions = array<i32: 0>} : vector<4x128xi32>
    %3 = tpu.iota {dimensions = array<i32: 1>} : vector<4x128xi32>
    %c128_i32 = arith.constant 128 : i32
    %4 = vector.broadcast %c128_i32 : i32 to vector<4x128xi32>
    %5 = arith.muli %2, %4 : vector<4x128xi32>
    %6 = vector.broadcast %1 : i32 to vector<4x128xi32>
    %7 = arith.addi %6, %5 : vector<4x128xi32>
    %8 = arith.addi %7, %3 : vector<4x128xi32>
    %c6_i32 = arith.constant 6 : i32
    %9 = vector.broadcast %c6_i32 : i32 to vector<4x128xi32>
    %10 = arith.shrsi %8, %9 : vector<4x128xi32>
    %11 = arith.sitofp %10 : vector<4x128xi32> to vector<4x128xf32>
    %c31_i32 = arith.constant 31 : i32
    %12 = vector.broadcast %c31_i32 : i32 to vector<4x128xi32>
    %13 = arith.andi %8, %12 : vector<4x128xi32>
    %c1_i32 = arith.constant 1 : i32
    %14 = vector.broadcast %c1_i32 : i32 to vector<4x128xi32>
    %15 = arith.andi %13, %14 : vector<4x128xi32>
    %16 = arith.subi %13, %15 : vector<4x128xi32>
    %17 = arith.sitofp %16 : vector<4x128xi32> to vector<4x128xf32>
    %cst = arith.constant -0.287823141 : f32
    %18 = vector.broadcast %cst : f32 to vector<4x128xf32>
    %19 = arith.mulf %17, %18 : vector<4x128xf32>
    %20 = math.exp %19 : vector<4x128xf32>
    %21 = arith.mulf %11, %20 : vector<4x128xf32>
    %c0_i32 = arith.constant 0 : i32
    %22 = vector.broadcast %c0_i32 : i32 to vector<4x128xi32>
    %23 = arith.cmpi eq, %15, %22 : vector<4x128xi32>
    %24 = math.sin %21 : vector<4x128xf32>
    %25 = math.cos %21 : vector<4x128xf32>
    %26 = arith.select %23, %24, %25 : vector<4x128xi1>, vector<4x128xf32>
    %27 = arith.addf %0, %26 : vector<4x128xf32>
    %c0_1 = arith.constant 0 : index
    %c0_2 = arith.constant 0 : index
    %28 = vector.load %arg2[%c0_1, %c0_2] : memref<4x128xf32, #tpu.memory_space<vmem>>, vector<4x128xf32>
    tpu.vector_store %arg2[%c0_1, %c0_2], %27 {strides = array<i32>} : memref<4x128xf32, #tpu.memory_space<vmem>>, vector<4x128xf32>,
    return
  }
  func.func @transform_0(%arg0: i32) -> (i32, i32) {
    %c0_i32 = arith.constant 0 : i32
    %c0_i32_0 = arith.constant 0 : i32
    return %arg0, %c0_i32 : i32, i32
  }
  func.func @transform_1(%arg0: i32) -> (i32, i32) {
    %c0_i32 = arith.constant 0 : i32
    %c0_i32_0 = arith.constant 0 : i32
    return %arg0, %c0_i32 : i32, i32
  }
}

</mosaic_0001>

<llo_original>
// kernel: tpu_custom_call.1
$region0: #{tpu_custom_call.1}
  #allocation0 [shape = 'u32[]', space=smem, size = 0x4, offset = 0x4, fixed_abs, tag = 'smem constant byte address 0x4 - core index']
  #allocation1 [shape = 'u32[144,128]{1,0:T(1,128)}', space=vmem, size = 0x12000, scoped, tag = 'internal scratch']
  %s0 = inlined_call_operand.hbm [shape: f32[4,128], index: 0, kind: input, shape index: {}]
  %s1 = inlined_call_operand.hbm [shape: f32[4,128], index: 1, kind: output, shape index: {}]
  %s2 = sld [smem:[#allocation0]]
  $region18: #{tpu_custom_call.1} parent=0
    _
  %s4 = ssub.s32 1, %s2
  %s5 = scalar_select 0, %s4, %s2
  $region1: #{tpu_custom_call.1} parent=0
    #allocation2 [shape = 'u8[2048]{0}', space=vmem, size = 0x800, scoped, tag = 'input window, operand 0, single buffered']
    #allocation3 [shape = 's32[1]{0}', space=sflag, size = 0x4, scoped, tag = 'scoped memory for tpu_custom_call.1']
    #allocation4 [shape = 's32[1]{0}', space=sflag, size = 0x4, scoped, tag = 'scoped memory for tpu_custom_call.1']
    #allocation5 [shape = 'u8[2048]{0}', space=vmem, size = 0x800, scoped, tag = 'output window, operand 0, single buffered']
    %6 = vsyncpa [#allocation3], 0
    %7 = vsyncpa [#allocation4], 0
    // Predicated region
    $region2: #{tpu_custom_call.1} parent=1 // pred_check
      _
    $region3: #{tpu_custom_call.1} parent=1 // pred_check_branch
      %9 = sbr.rel (0) target = $region5
    $region4: #{tpu_custom_call.1} parent=1 // pred_region
      %s11 = ssub.s32 64, 64
      %12 = vsyncadd [#allocation3], %s11
      %s14 = sshll.u32 [#allocation2], 4
      %s15 = int_to_ptr.vmem [resolvable:$true] %s14
      %17 = dma.hbm_to_vmem [thread:$0]  %s0, 64, %s15, [#allocation3]
    $region5: #{tpu_custom_call.1} parent=1 // pred_fallthru
      _
    // Predicated region
    $region6: #{tpu_custom_call.1} parent=1 // pred_check
      _
    $region7: #{tpu_custom_call.1} parent=1 // pred_check_branch
      %19 = sbr.rel (0) target = $region9
    $region8: #{tpu_custom_call.1} parent=1 // pred_region
      %20 = dma.done [#allocation3], 64
    $region9: #{tpu_custom_call.1} parent=1 // pred_fallthru
      _
    %v21 = vld [vmem:[#allocation2] sm:$0xf]
    %s22 = smul.u32 0, 512
    %v23 = vlaneseq
    %v24 = vshrl.u32 %v23, 7
    %v25 = vlaneseq
    %v26 = vand.u32 %v25, 127
    %v27 = vmul.u32 %v24, 128
    %v28 = vstv %s22
    %v29 = vadd.s32 %v28, %v27
    %v30 = vadd.s32 %v29, %v26
    %v31 = vshra.s32 %v30, 6
    %v32 = vcvt.s32.f32 %v31
    %v33 = vand.u32 %v30, 31
    %v34 = vand.u32 %v33, 1
    %v35 = vsub.s32 %v33, %v34
    %v36 = vcvt.s32.f32 %v35
    %v37 = vmul.f32 %v36, -0.28782314
    %v38 = vmul.f32 %v37, 1.442695
    %v39 = vpow.pop %v38
    %v40 = vmul.f32 %v32, %v39
    %vm41 = vcmp.eq.s32.totalorder %v34, 0
    %v42 = vand.u32 2147483647, %v40
    %vm43 = vcmp.le.f32.partialorder %v42, 0.7853982
    %vm44 = vcmp.lt.s32.totalorder %v40, 0
    %v45 = vand.u32 %v40, 2139095040
    %v46 = vshrl.u32 %v45, 23
    %v47 = vsub.s32 %v46, 127
    %v48 = vand.u32 2147483647, %v40
    %v49 = vand.u32 %v48, 8388607
    %v50 = vor.u32 %v49, 8388608
    %v51 = vsub.s32 0, %v50
    %v52 = vadd.s32 %v47, 1
    %vm53 = vcmp.gt.s32.totalorder %v52, 0
    %v54 = vsel %vm53, %v52, 0
    %v55 = vshrl.u32 %v54, 5
    %v56 = vand.u32 %v54, 31
    %v57 = vsub.s32 32, %v56
    %v58 = vshrl.u32 683565275, %v57
    %v59 = vshll.u32 683565275, %v56
    %v60 = vshrl.u32 2475754826, %v57
    %v61 = vor.u32 %v59, %v60
    %v62 = vshll.u32 2475754826, %v56
    %v63 = vshrl.u32 2131351028, %v57
    %v64 = vor.u32 %v62, %v63
    %v65 = vshll.u32 2131351028, %v56
    %v66 = vshrl.u32 2102212464, %v57
    %v67 = vor.u32 %v65, %v66
    %v68 = vshll.u32 2102212464, %v56
    %v69 = vshrl.u32 920167782, %v57
    %v70 = vor.u32 %v68, %v69
    %v71 = vshll.u32 920167782, %v56
    %v72 = vshrl.u32 1326507024, %v57
    %v73 = vor.u32 %v71, %v72
    %vm74 = vcmp.lt.s32.totalorder %v55, 1
    %vm75 = vcmp.lt.s32.totalorder %v55, 2
    %vm76 = vcmp.lt.s32.totalorder %v55, 3
    %vm77 = vcmp.lt.s32.totalorder %v55, 4
    %v78 = vsel %vm74, %v58, %v61
    %v79 = vsel %vm77, %v67, 2102212464
    %v80 = vsel %vm76, %v64, %v79
    %v81 = vsel %vm75, %v78, %v80
    %v82 = vsel %vm74, %v61, %v64
    %v83 = vsel %vm77, %v70, 920167782
    %v84 = vsel %vm76, %v67, %v83
    %v85 = vsel %vm75, %v82, %v84
    %v86 = vsel %vm74, %v64, %v67
    %v87 = vsel %vm77, %v73, 1326507024
    %v88 = vsel %vm76, %v70, %v87
    %v89 = vsel %vm75, %v86, %v88
    %v90 = vshll.u32 %v50, 8
    %v91 = vmul.u32.u64.compose %v90, %v89
    %v92 = vextract.low.u32 %v91
    %v93 = vextract.high.u32 %v91
    %v94 = vmul.u32.u64.compose %v90, %v85
    %v95 = vextract.low.u32 %v94
    %v96 = vextract.high.u32 %v94
    %v97 = vmul.u32 %v90, %v81
    %v98 = vadd.s32 %v93, %v95
    %vm99 = vc.u32 %v93, %v95
    %v100 = vadd.s32 %v96, 1
    %v101 = vsel %vm99, %v100, %v96
    %v102 = vadd.s32 %v97, %v101
    %v103 = vadd.s32 %v102, 536870912
    %v104 = vshrl.u32 %v103, 30
    %v105 = vshll.u32 %v104, 30
    %v106 = vsub.s32 %v102, %v105
    %vm107 = vcmp.lt.s32.totalorder %v106, 0
    %v108 = vsub.s32 0, %v106
    %v109 = vsel %vm107, %v108, %v106
    %v110 = vclz %v109
    %v111 = vsub.s32 %v110, 2
    %vm112 = vcmp.gt.s32.totalorder 0, %v111
    %v113 = vsel %vm112, 0, %v111
    %v114 = vsub.s32 32, %v113
    %v115 = vshll.u32 %v106, %v113
    %v116 = vshrl.u32 %v98, %v114
    %v117 = vor.u32 %v115, %v116
    %v118 = vsub.s32 4294967266, %v113
    %v119 = vadd.s32 %v118, 127
    %v120 = vshll.u32 %v119, 23
    %v121 = vor.u32 4788187, %v120
    %v122 = vand.u32 2147483647, %v121
    %v124 = vcvt.s32.f32 %v117
    %v125 = vmul.f32 %v124, %v122
    %v126 = vxor.u32 %v125, 2147483648
    %v127 = vsel %vm44, %v126, %v125
    %v128 = vsub.s32 4, %v104
    %v129 = vsel %vm44, %v128, %v104
    %v130 = vsel %vm43, %v40, %v127
    %v131 = vsel %vm43, 0, %v129
    %v132 = vcosq.f32.pop %v130
    %v133 = vsinq.f32.pop %v130
    %vm134 = vweird.f32 %v40
    %v135 = vadd.s32 %v131, 3
    %v136 = vand.u32 %v135, 3
    %vm137 = vcmp.lt.s32.totalorder %v136, 2
    %vm138 = vcmp.eq.s32.totalorder %v136, 0
    %v139 = vxor.u32 %v133, 2147483648
    %v140 = vsel %vm138, %v132, %v139
    %vm141 = vcmp.eq.s32.totalorder %v136, 2
    %v142 = vxor.u32 %v132, 2147483648
    %v143 = vsel %vm141, %v142, %v133
    %v144 = vsel %vm137, %v140, %v143
    %v145 = vsel %vm134, nan, %v144
    %v146 = vand.u32 2147483647, %v40
    %vm147 = vcmp.le.f32.partialorder %v146, 0.7853982
    %vm148 = vcmp.lt.s32.totalorder %v40, 0
    %v149 = vand.u32 %v40, 2139095040
    %v150 = vshrl.u32 %v149, 23
    %v151 = vsub.s32 %v150, 127
    %v152 = vand.u32 2147483647, %v40
    %v153 = vand.u32 %v152, 8388607
    %v154 = vor.u32 %v153, 8388608
    %v155 = vsub.s32 0, %v154
    %v156 = vadd.s32 %v151, 1
    %vm157 = vcmp.gt.s32.totalorder %v156, 0
    %v158 = vsel %vm157, %v156, 0
    %v159 = vshrl.u32 %v158, 5
    %v160 = vand.u32 %v158, 31
    %v161 = vsub.s32 32, %v160
    %v162 = vshrl.u32 683565275, %v161
    %v163 = vshll.u32 683565275, %v160
    %v164 = vshrl.u32 2475754826, %v161
    %v165 = vor.u32 %v163, %v164
    %v166 = vshll.u32 2475754826, %v160
    %v167 = vshrl.u32 2131351028, %v161
    %v168 = vor.u32 %v166, %v167
    %v169 = vshll.u32 2131351028, %v160
    %v170 = vshrl.u32 2102212464, %v161
    %v171 = vor.u32 %v169, %v170
    %v172 = vshll.u32 2102212464, %v160
    %v173 = vshrl.u32 920167782, %v161
    %v174 = vor.u32 %v172, %v173
    %v175 = vshll.u32 920167782, %v160
    %v176 = vshrl.u32 1326507024, %v161
    %v177 = vor.u32 %v175, %v176
    %vm178 = vcmp.lt.s32.totalorder %v159, 1
    %vm179 = vcmp.lt.s32.totalorder %v159, 2
    %vm180 = vcmp.lt.s32.totalorder %v159, 3
    %vm181 = vcmp.lt.s32.totalorder %v159, 4
    %v182 = vsel %vm178, %v162, %v165
    %v183 = vsel %vm181, %v171, 2102212464
    %v184 = vsel %vm180, %v168, %v183
    %v185 = vsel %vm179, %v182, %v184
    %v186 = vsel %vm178, %v165, %v168
    %v187 = vsel %vm181, %v174, 920167782
    %v188 = vsel %vm180, %v171, %v187
    %v189 = vsel %vm179, %v186, %v188
    %v190 = vsel %vm178, %v168, %v171
    %v191 = vsel %vm181, %v177, 1326507024
    %v192 = vsel %vm180, %v174, %v191
    %v193 = vsel %vm179, %v190, %v192
    %v194 = vshll.u32 %v154, 8
    %v195 = vmul.u32.u64.compose %v194, %v193
    %v196 = vextract.low.u32 %v195
    %v197 = vextract.high.u32 %v195
    %v198 = vmul.u32.u64.compose %v194, %v189
    %v199 = vextract.low.u32 %v198
    %v200 = vextract.high.u32 %v198
    %v201 = vmul.u32 %v194, %v185
    %v202 = vadd.s32 %v197, %v199
    %vm203 = vc.u32 %v197, %v199
    %v204 = vadd.s32 %v200, 1
    %v205 = vsel %vm203, %v204, %v200
    %v206 = vadd.s32 %v201, %v205
    %v207 = vadd.s32 %v206, 536870912
    %v208 = vshrl.u32 %v207, 30
    %v209 = vshll.u32 %v208, 30
    %v210 = vsub.s32 %v206, %v209
    %vm211 = vcmp.lt.s32.totalorder %v210, 0
    %v212 = vsub.s32 0, %v210
    %v213 = vsel %vm211, %v212, %v210
    %v214 = vclz %v213
    %v215 = vsub.s32 %v214, 2
    %vm216 = vcmp.gt.s32.totalorder 0, %v215
    %v217 = vsel %vm216, 0, %v215
    %v218 = vsub.s32 32, %v217
    %v219 = vshll.u32 %v210, %v217
    %v220 = vshrl.u32 %v202, %v218
    %v221 = vor.u32 %v219, %v220
    %v222 = vsub.s32 4294967266, %v217
    %v223 = vadd.s32 %v222, 127
    %v224 = vshll.u32 %v223, 23
    %v225 = vor.u32 4788187, %v224
    %v226 = vand.u32 2147483647, %v225
    %v228 = vcvt.s32.f32 %v221
    %v229 = vmul.f32 %v228, %v226
    %v230 = vxor.u32 %v229, 2147483648
    %v231 = vsel %vm148, %v230, %v229
    %v232 = vsub.s32 4, %v208
    %v233 = vsel %vm148, %v232, %v208
    %v234 = vsel %vm147, %v40, %v231
    %v235 = vsel %vm147, 0, %v233
    %v236 = vcosq.f32.pop %v234
    %v237 = vsinq.f32.pop %v234
    %vm238 = vweird.f32 %v40
    %v239 = vand.u32 %v235, 3
    %vm240 = vcmp.lt.s32.totalorder %v239, 2
    %vm241 = vcmp.eq.s32.totalorder %v239, 0
    %v242 = vxor.u32 %v237, 2147483648
    %v243 = vsel %vm241, %v236, %v242
    %vm244 = vcmp.eq.s32.totalorder %v239, 2
    %v245 = vxor.u32 %v236, 2147483648
    %v246 = vsel %vm244, %v245, %v237
    %v247 = vsel %vm240, %v243, %v246
    %v248 = vsel %vm238, nan, %v247
    %v249 = vsel %vm41, %v145, %v248
    %v250 = vadd.f32 %v21, %v249
    %251 = vst [vmem:[#allocation5] sm:$0xf] %v250
    // Predicated region
    $region10: #{tpu_custom_call.1} parent=1 // pred_check
      _
    $region11: #{tpu_custom_call.1} parent=1 // pred_check_branch
      %253 = sbr.rel (0) target = $region13
    $region12: #{tpu_custom_call.1} parent=1 // pred_region
      %s255 = ssub.s32 64, 64
      %256 = vsyncadd [#allocation4], %s255
      %s258 = sshll.u32 [#allocation5], 4
      %s259 = int_to_ptr.vmem [resolvable:$true] %s258
      %261 = dma.vmem_to_hbm [thread:$0]  %s259, 64, %s1, [#allocation4]
    $region13: #{tpu_custom_call.1} parent=1 // pred_fallthru
      _
    // Predicated region
    $region14: #{tpu_custom_call.1} parent=1 // pred_check
      _
    $region15: #{tpu_custom_call.1} parent=1 // pred_check_branch
      %263 = sbr.rel (0) target = $region17
    $region16: #{tpu_custom_call.1} parent=1 // pred_region
      %264 = dma.done [#allocation4], 64
    $region17: #{tpu_custom_call.1} parent=1 // pred_fallthru
      _
    %265 = vsyncpa [#allocation3], 1
    %266 = vsyncpa [#allocation4], 1

</llo_original>
